<compile_context>
chip_gen: v7x
topology: tpu7x:2x2x1
jax: 0.10.0
libtpu: 0.0.40
codegen_flags: <defaults>
</compile_context>

<pallas_src>
import functools

import jax
import jax.numpy as jnp
from jax.experimental import pallas as pl
from jax.experimental.pallas import tpu as pltpu

LANE = 128


def _round_up(x: int, m: int) -> int:
    return ((x + m - 1) // m) * m


def _device_kind() -> str:
    try:
        return jax.devices()[0].device_kind.lower()
    except Exception:
        return ""


def _tensorcores_per_chip() -> int:
    kind = _device_kind()
    # v7x: 2 TensorCores per chip; v4/v5p: megacore (2 TCs).  v5e/v6e: 1.
    if "v7" in kind or "v4" in kind or "v5p" in kind:
        return 2
    return 1


def _block_byte_budget() -> int:
    kind = _device_kind()
    if "v7" in kind:
        return 2 * 1024 * 1024   # ~3.2 TB/s per TC: bigger blocks amortize per-step overhead
    return 1 * 1024 * 1024       # v5e/v6e: already HBM-bound at 1 MiB blocks


def _wmse_kernel(pred_ref, tgt_ref, out_ref, acc_ref, *, alpha, valid_rows,
                 acc_rows):
    c = pl.program_id(0)
    i = pl.program_id(1)
    n_inner = pl.num_programs(1)

    @pl.when(i == 0)
    def _():
        acc_ref[...] = jnp.zeros_like(acc_ref)

    tile_rows = tgt_ref.shape[0]
    block_start = (c * n_inner + i) * tile_rows

    def wse_block():
        t = tgt_ref[...].astype(jnp.float32)
        p = pred_ref[...].astype(jnp.float32)
        d = t - p
        return d * d * (1.0 + alpha * t)

    def accumulate(w):
        # Layout-preserving split of the sublane axis -> acc_rows independent
        # per-lane accumulation chains (pure VPU adds).
        acc_ref[...] += w.reshape(tile_rows // acc_rows, acc_rows, LANE).sum(axis=0)

    # Interior blocks: every row is valid -> no per-element masking work.
    @pl.when(block_start + tile_rows <= valid_rows)
    def _():
        accumulate(wse_block())

    # Boundary (partial) block: mask with a SELECT so garbage rows (possibly
    # inf/NaN) are dropped, never multiplied.
    @pl.when(jnp.logical_and(block_start < valid_rows,
                             block_start + tile_rows > valid_rows))
    def _():
        w = wse_block()
        row_ids = block_start + jax.lax.broadcasted_iota(
            jnp.int32, (tile_rows, LANE), 0)
        accumulate(jnp.where(row_ids < valid_rows, w, 0.0))

    # Clamped overflow blocks (block_start >= valid_rows): no compute at all.

    @pl.when(i == n_inner - 1)
    def _():
        # One cross-sublane reduce per core, deferred to the last step.
        out_ref[...] = jnp.sum(acc_ref[...], axis=0, keepdims=True)


def weighted_mse_loss(prediction: jax.Array, target: jax.Array,
                      alpha: float = 9.0) -> jax.Array:
    """Weighted MSE: mean((target - prediction)^2 * (1 + alpha * target)).

    Note: alpha is treated as a compile-time constant; mark it static if you
    wrap this function in jax.jit.
    """
    assert prediction.shape == target.shape
    n = prediction.size
    if n == 0:
        return jnp.float32(0.0)
    alpha = float(alpha)

    pred_flat = prediction.reshape(-1)   # native dtype: no wrapper-side upcast
    tgt_flat = target.reshape(-1)

    rows = n // LANE                     # whole 128-lane rows
    n_aligned = rows * LANE

    # Tail (< 128 elements) of ragged sizes: tiny jnp epilogue instead of a
    # full jnp.pad HBM round trip of both inputs.
    if n_aligned < n:
        tp = tgt_flat[n_aligned:].astype(jnp.float32)
        pp = pred_flat[n_aligned:].astype(jnp.float32)
        dt = tp - pp
        tail_sum = jnp.sum(dt * dt * (1.0 + alpha * tp))
    else:
        tail_sum = jnp.float32(0.0)

    if rows == 0:
        # Fewer than 128 elements: a kernel launch is pure overhead.
        return tail_sum / n

    if n_aligned == n:
        main_pred, main_tgt = pred_flat, tgt_flat
    else:
        main_pred = pred_flat[:n_aligned]
        main_tgt = tgt_flat[:n_aligned]

    pred2d = main_pred.reshape(rows, LANE)
    tgt2d = main_tgt.reshape(rows, LANE)

    p_item = jnp.dtype(prediction.dtype).itemsize
    t_item = jnp.dtype(target.dtype).itemsize
    # Native sublane packing: 8 rows for 32-bit, 16 for bf16, 32 for 8-bit.
    packing = max(8, 32 // max(1, min(p_item, t_item)))

    budget = _block_byte_budget()
    max_rows = (budget // (LANE * max(p_item, t_item))) // packing * packing
    max_rows = min(max(packing, max_rows), 8192)
    tile_rows = min(max_rows, _round_up(rows, packing))

    # Widest accumulator (<=32 sublanes) that divides the tile.
    if tile_rows % 32 == 0:
        acc_rows = 32
    elif tile_rows % 16 == 0:
        acc_rows = 16
    else:
        acc_rows = 8

    num_blocks = pl.cdiv(rows, tile_rows)
    num_cores = max(1, min(_tensorcores_per_chip(), num_blocks))
    blocks_per_core = pl.cdiv(num_blocks, num_cores)

    def in_map(c, i):
        # Clamp overflow blocks of the parallel axis onto the last real
        # block; the kernel skips their compute entirely.
        return (jnp.minimum(c * blocks_per_core + i, num_blocks - 1), 0)

    kernel = functools.partial(_wmse_kernel, alpha=alpha, valid_rows=rows,
                               acc_rows=acc_rows)

    partials = pl.pallas_call(
        kernel,
        out_shape=jax.ShapeDtypeStruct((num_cores, LANE), jnp.float32),
        grid_spec=pltpu.PrefetchScalarGridSpec(
            num_scalar_prefetch=0,
            grid=(num_cores, blocks_per_core),
            in_specs=[
                pl.BlockSpec((tile_rows, LANE), in_map),
                pl.BlockSpec((tile_rows, LANE), in_map),
            ],
            out_specs=pl.BlockSpec((1, LANE), lambda c, i: (c, 0)),
            scratch_shapes=[pltpu.VMEM((acc_rows, LANE), jnp.float32)],
        ),
        compiler_params=pltpu.CompilerParams(
            dimension_semantics=("parallel", "arbitrary"),
            vmem_limit_bytes=32 * 1024 * 1024,
        ),
    )(pred2d, tgt2d)

    # Per-core (1,128) partial sums + tail -> scalar mean (tiny XLA epilogue).
    return (jnp.sum(partials) + tail_sum) / n


class WeightedMSELoss:
    """Mirror of the PyTorch module interface."""

    def __init__(self, alpha: float = 9.0):
        self.alpha = float(alpha)

    def __call__(self, prediction: jax.Array, target: jax.Array) -> jax.Array:
        return weighted_mse_loss(prediction, target, self.alpha)


if __name__ == "__main__":
    key = jax.random.PRNGKey(0)
    k1, k2, k3, k4 = jax.random.split(key, 4)

    # Shapes consistent with a typical NCHW use: batch=2, channels=4, 16x16.
    prediction = jax.random.normal(k1, (2, 4, 16, 16), dtype=jnp.float32)
    target = jax.random.normal(k2, (2, 4, 16, 16), dtype=jnp.float32)

    loss_fn = WeightedMSELoss(alpha=9.0)
    loss = jax.block_until_ready(loss_fn(prediction, target))
    ref = jnp.mean((target - prediction) ** 2 * (1.0 + 9.0 * target))
    assert jnp.allclose(loss, ref, rtol=1e-5, atol=1e-5), (loss, ref)

    # Ragged element count (not a multiple of 128): exercises the aligned
    # kernel region (masked boundary block) + jnp tail epilogue.
    p2 = jax.random.normal(k3, (3, 5, 7, 11), dtype=jnp.float32)
    t2 = jax.random.normal(k4, (3, 5, 7, 11), dtype=jnp.float32)
    loss2 = jax.block_until_ready(weighted_mse_loss(p2, t2, 9.0))
    ref2 = jnp.mean((t2 - p2) ** 2 * (1.0 + 9.0 * t2))
    assert jnp.allclose(loss2, ref2, rtol=1e-5, atol=1e-5), (loss2, ref2)

    print("KERNEL_OK")
</pallas_src>

<mosaic_0001>
module attributes {stable_mosaic.version = 11 : i64} {
  func.func @_wmse_kernel(%arg0: i32, %arg1: i32, %arg2: memref<16x128xf32, #tpu.memory_space<vmem>>, %arg3: memref<16x128xf32, #tpu.memory_space<vmem>>, %arg4: memref<1x128xf32, #tpu.memory_space<vmem>>, %arg5: memref<16x128xf32, #tpu.memory_space<vmem>>) attributes {dimension_semantics = [#tpu.dimension_semantics<parallel>, #tpu.dimension_semantics<arbitrary>], iteration_bounds = array<i64: 1, 1>, scalar_prefetch = 0 : i64, scratch_operands = 1 : i64, tpu.core_type = #tpu.core_type<tc>, window_params = [{transform_indices = @transform_0, window_bounds = array<i64: 16, 128>}, {transform_indices = @transform_1, window_bounds = array<i64: 16, 128>}, {transform_indices = @transform_2, window_bounds = array<i64: 1, 128>}]} {
    %c0_i32 = arith.constant 0 : i32
    %0 = arith.cmpi eq, %arg1, %c0_i32 : i32
    %1 = arith.extui %0 : i1 to i32
    %c0_i32_0 = arith.constant 0 : i32
    %2 = arith.cmpi ne, %1, %c0_i32_0 : i32
    scf.if %2 {
      %cst = arith.constant 0.000000e+00 : f32
      %19 = vector.broadcast %cst : f32 to vector<16x128xf32>
      %c0 = arith.constant 0 : index
      %c0_10 = arith.constant 0 : index
      %20 = vector.load %arg5[%c0, %c0_10] : memref<16x128xf32, #tpu.memory_space<vmem>>, vector<16x128xf32>
      tpu.vector_store %arg5[%c0, %c0_10], %19 {strides = array<i32>} : memref<16x128xf32, #tpu.memory_space<vmem>>, vector<16x128xf32>,
    } else {
    }
    %c1_i32 = arith.constant 1 : i32
    %3 = arith.muli %arg0, %c1_i32 : i32
    %4 = arith.addi %3, %arg1 : i32
    %c16_i32 = arith.constant 16 : i32
    %5 = arith.muli %4, %c16_i32 : i32
    %c16_i32_1 = arith.constant 16 : i32
    %6 = arith.addi %5, %c16_i32_1 : i32
    %c16_i32_2 = arith.constant 16 : i32
    %7 = arith.cmpi sle, %6, %c16_i32_2 : i32
    %8 = arith.extui %7 : i1 to i32
    %c0_i32_3 = arith.constant 0 : i32
    %9 = arith.cmpi ne, %8, %c0_i32_3 : i32
    scf.if %9 {
      %c0 = arith.constant 0 : index
      %c0_10 = arith.constant 0 : index
      %19 = vector.load %arg3[%c0, %c0_10] : memref<16x128xf32, #tpu.memory_space<vmem>>, vector<16x128xf32>
      %c0_11 = arith.constant 0 : index
      %c0_12 = arith.constant 0 : index
      %20 = vector.load %arg2[%c0_11, %c0_12] : memref<16x128xf32, #tpu.memory_space<vmem>>, vector<16x128xf32>
      %21 = arith.subf %19, %20 : vector<16x128xf32>
      %22 = arith.mulf %21, %21 : vector<16x128xf32>
      %cst = arith.constant 9.000000e+00 : f32
      %23 = vector.broadcast %cst : f32 to vector<16x128xf32>
      %24 = arith.mulf %23, %19 : vector<16x128xf32>
      %cst_13 = arith.constant 1.000000e+00 : f32
      %25 = vector.broadcast %cst_13 : f32 to vector<16x128xf32>
      %26 = arith.addf %25, %24 : vector<16x128xf32>
      %27 = arith.mulf %22, %26 : vector<16x128xf32>
      %c0_14 = arith.constant 0 : index
      %c0_15 = arith.constant 0 : index
      %28 = vector.load %arg5[%c0_14, %c0_15] : memref<16x128xf32, #tpu.memory_space<vmem>>, vector<16x128xf32>
      %29 = vector.shape_cast %27 : vector<16x128xf32> to vector<1x16x128xf32>
      %cst_16 = arith.constant dense<0.000000e+00> : vector<16x128xf32>
      %30 = vector.multi_reduction <add>, %29, %cst_16 [0] : vector<1x16x128xf32> to vector<16x128xf32>
      %31 = arith.addf %28, %30 : vector<16x128xf32>
      %c0_17 = arith.constant 0 : index
      %c0_18 = arith.constant 0 : index
      %32 = vector.load %arg5[%c0_17, %c0_18] : memref<16x128xf32, #tpu.memory_space<vmem>>, vector<16x128xf32>
      tpu.vector_store %arg5[%c0_17, %c0_18], %31 {strides = array<i32>} : memref<16x128xf32, #tpu.memory_space<vmem>>, vector<16x128xf32>,
    } else {
    }
    %c16_i32_4 = arith.constant 16 : i32
    %10 = arith.cmpi slt, %5, %c16_i32_4 : i32
    %c16_i32_5 = arith.constant 16 : i32
    %11 = arith.addi %5, %c16_i32_5 : i32
    %c16_i32_6 = arith.constant 16 : i32
    %12 = arith.cmpi sgt, %11, %c16_i32_6 : i32
    %13 = arith.andi %10, %12 : i1
    %14 = arith.extui %13 : i1 to i32
    %c0_i32_7 = arith.constant 0 : i32
    %15 = arith.cmpi ne, %14, %c0_i32_7 : i32
    scf.if %15 {
      %c0 = arith.constant 0 : index
      %c0_10 = arith.constant 0 : index
      %19 = vector.load %arg3[%c0, %c0_10] : memref<16x128xf32, #tpu.memory_space<vmem>>, vector<16x128xf32>
      %c0_11 = arith.constant 0 : index
      %c0_12 = arith.constant 0 : index
      %20 = vector.load %arg2[%c0_11, %c0_12] : memref<16x128xf32, #tpu.memory_space<vmem>>, vector<16x128xf32>
      %21 = arith.subf %19, %20 : vector<16x128xf32>
      %22 = arith.mulf %21, %21 : vector<16x128xf32>
      %cst = arith.constant 9.000000e+00 : f32
      %23 = vector.broadcast %cst : f32 to vector<16x128xf32>
      %24 = arith.mulf %23, %19 : vector<16x128xf32>
      %cst_13 = arith.constant 1.000000e+00 : f32
      %25 = vector.broadcast %cst_13 : f32 to vector<16x128xf32>
      %26 = arith.addf %25, %24 : vector<16x128xf32>
      %27 = arith.mulf %22, %26 : vector<16x128xf32>
      %28 = tpu.iota {dimensions = array<i32: 0>} : vector<16x128xi32>
      %29 = vector.broadcast %5 : i32 to vector<16x128xi32>
      %30 = arith.addi %29, %28 : vector<16x128xi32>
      %c16_i32_14 = arith.constant 16 : i32
      %31 = vector.broadcast %c16_i32_14 : i32 to vector<16x128xi32>
      %32 = arith.cmpi slt, %30, %31 : vector<16x128xi32>
      %cst_15 = arith.constant 0.000000e+00 : f32
      %33 = vector.broadcast %cst_15 : f32 to vector<16x128xf32>
      %34 = arith.select %32, %27, %33 : vector<16x128xi1>, vector<16x128xf32>
      %c0_16 = arith.constant 0 : index
      %c0_17 = arith.constant 0 : index
      %35 = vector.load %arg5[%c0_16, %c0_17] : memref<16x128xf32, #tpu.memory_space<vmem>>, vector<16x128xf32>
      %36 = vector.shape_cast %34 : vector<16x128xf32> to vector<1x16x128xf32>
      %cst_18 = arith.constant dense<0.000000e+00> : vector<16x128xf32>
      %37 = vector.multi_reduction <add>, %36, %cst_18 [0] : vector<1x16x128xf32> to vector<16x128xf32>
      %38 = arith.addf %35, %37 : vector<16x128xf32>
      %c0_19 = arith.constant 0 : index
      %c0_20 = arith.constant 0 : index
      %39 = vector.load %arg5[%c0_19, %c0_20] : memref<16x128xf32, #tpu.memory_space<vmem>>, vector<16x128xf32>
      tpu.vector_store %arg5[%c0_19, %c0_20], %38 {strides = array<i32>} : memref<16x128xf32, #tpu.memory_space<vmem>>, vector<16x128xf32>,
    } else {
    }
    %c0_i32_8 = arith.constant 0 : i32
    %16 = arith.cmpi eq, %arg1, %c0_i32_8 : i32
    %17 = arith.extui %16 : i1 to i32
    %c0_i32_9 = arith.constant 0 : i32
    %18 = arith.cmpi ne, %17, %c0_i32_9 : i32
    scf.if %18 {
      %c0 = arith.constant 0 : index
      %c0_10 = arith.constant 0 : index
      %19 = vector.load %arg5[%c0, %c0_10] : memref<16x128xf32, #tpu.memory_space<vmem>>, vector<16x128xf32>
      %cst = arith.constant dense<0.000000e+00> : vector<128xf32>
      %20 = vector.multi_reduction <add>, %19, %cst [0] : vector<16x128xf32> to vector<128xf32>
      %21 = vector.shape_cast %20 : vector<128xf32> to vector<1x128xf32>
      %c0_11 = arith.constant 0 : index
      %c0_12 = arith.constant 0 : index
      %22 = vector.load %arg4[%c0_11, %c0_12] : memref<1x128xf32, #tpu.memory_space<vmem>>, vector<1x128xf32>
      tpu.vector_store %arg4[%c0_11, %c0_12], %21 {strides = array<i32>} : memref<1x128xf32, #tpu.memory_space<vmem>>, vector<1x128xf32>,
    } else {
    }
    return
  }
  func.func @transform_0(%arg0: i32, %arg1: i32) -> (i32, i32) {
    %c1_i32 = arith.constant 1 : i32
    %0 = arith.muli %arg0, %c1_i32 : i32
    %1 = arith.addi %0, %arg1 : i32
    %c0_i32 = arith.constant 0 : i32
    %2 = arith.minsi %1, %c0_i32 : i32
    %c0_i32_0 = arith.constant 0 : i32
    %c0_i32_1 = arith.constant 0 : i32
    return %2, %c0_i32_0 : i32, i32
  }
  func.func @transform_1(%arg0: i32, %arg1: i32) -> (i32, i32) {
    %c1_i32 = arith.constant 1 : i32
    %0 = arith.muli %arg0, %c1_i32 : i32
    %1 = arith.addi %0, %arg1 : i32
    %c0_i32 = arith.constant 0 : i32
    %2 = arith.minsi %1, %c0_i32 : i32
    %c0_i32_0 = arith.constant 0 : i32
    %c0_i32_1 = arith.constant 0 : i32
    return %2, %c0_i32_0 : i32, i32
  }
  func.func @transform_2(%arg0: i32, %arg1: i32) -> (i32, i32) {
    %c0_i32 = arith.constant 0 : i32
    %c0_i32_0 = arith.constant 0 : i32
    return %arg0, %c0_i32 : i32, i32
  }
}

</mosaic_0001>

<llo_original>
// kernel: tpu_custom_call.1
$region0: #{tpu_custom_call.1}
  #allocation0 [shape = 'u32[]', space=smem, size = 0x4, offset = 0x4, fixed_abs, tag = 'smem constant byte address 0x4 - core index']
  #allocation1 [shape = 'u32[144,128]{1,0:T(1,128)}', space=vmem, size = 0x12000, scoped, tag = 'internal scratch']
  #allocation2 [shape = 'f32[16,128]{1,0:T(8,128)}', space=vmem, size = 0x2000, scoped, tag = 'scratch operand']
  %s0 = inlined_call_operand.hbm [shape: f32[16,128], index: 0, kind: input, shape index: {}]
  %s1 = inlined_call_operand.hbm [shape: f32[16,128], index: 1, kind: input, shape index: {}]
  %s2 = inlined_call_operand.hbm [shape: f32[1,128], index: 2, kind: output, shape index: {}]
  %s3 = sld [smem:[#allocation0]]
  $region42: #{tpu_custom_call.1} parent=0
    _
  %s5 = ssub.s32 1, %s3
  %s6 = scalar_select 0, %s5, %s3
  $region1: #{tpu_custom_call.1} parent=0
    #allocation3 [shape = 'u8[8192]{0}', space=vmem, size = 0x2000, scoped, tag = 'input window, operand 0, single buffered']
    #allocation4 [shape = 's32[1]{0}', space=sflag, size = 0x4, scoped, tag = 'scoped memory for tpu_custom_call.1']
    #allocation5 [shape = 's32[1]{0}', space=sflag, size = 0x4, scoped, tag = 'scoped memory for tpu_custom_call.1']
    #allocation6 [shape = 'u8[8192]{0}', space=vmem, size = 0x2000, scoped, tag = 'input window, operand 1, single buffered']
    #allocation7 [shape = 's32[1]{0}', space=sflag, size = 0x4, scoped, tag = 'scoped memory for tpu_custom_call.1']
    #allocation8 [shape = 'u8[512]{0}', space=vmem, size = 0x400, scoped, tag = 'output window, operand 0, single buffered']
    %7 = vsyncpa [#allocation4], 0
    %8 = vsyncpa [#allocation7], 0
    %9 = vsyncpa [#allocation5], 0
    // Predicated region
    $region2: #{tpu_custom_call.1} parent=1 // pred_check
      _
    $region3: #{tpu_custom_call.1} parent=1 // pred_check_branch
      %11 = sbr.rel (0) target = $region5
    $region4: #{tpu_custom_call.1} parent=1 // pred_region
      %s12 = sadd.s32 0, 0
      %p13 = scmp.lt.s32.totalorder %s12, 0
      %s14 = scalar_select %p13, %s12, 0
      %s15 = smul.u32 2, %s14
      %s17 = ssub.s32 256, 256
      %18 = vsyncadd [#allocation4], %s17
      %s19 = smul.addr %s15, 128
      %s20 = scalar_lea.hbm %s0, %s19
      %s21 = sshll.u32 [#allocation3], 4
      %s22 = int_to_ptr.vmem [resolvable:$true] %s21
      %27 = dma.hbm_to_vmem [thread:$0]  %s20, 256, %s22, [#allocation4], 128, 128, 8
    $region5: #{tpu_custom_call.1} parent=1 // pred_fallthru
      _
    // Predicated region
    $region6: #{tpu_custom_call.1} parent=1 // pred_check
      _
    $region7: #{tpu_custom_call.1} parent=1 // pred_check_branch
      %29 = sbr.rel (0) target = $region9
    $region8: #{tpu_custom_call.1} parent=1 // pred_region
      %s30 = sadd.s32 0, 0
      %p31 = scmp.lt.s32.totalorder %s30, 0
      %s32 = scalar_select %p31, %s30, 0
      %s33 = smul.u32 2, %s32
      %s35 = ssub.s32 256, 256
      %36 = vsyncadd [#allocation7], %s35
      %s37 = smul.addr %s33, 128
      %s38 = scalar_lea.hbm %s1, %s37
      %s39 = sshll.u32 [#allocation6], 4
      %s40 = int_to_ptr.vmem [resolvable:$true] %s39
      %45 = dma.hbm_to_vmem [thread:$0]  %s38, 256, %s40, [#allocation7], 128, 128, 8
    $region9: #{tpu_custom_call.1} parent=1 // pred_fallthru
      _
    // Predicated region
    $region10: #{tpu_custom_call.1} parent=1 // pred_check
      _
    $region11: #{tpu_custom_call.1} parent=1 // pred_check_branch
      %47 = sbr.rel (0) target = $region13
    $region12: #{tpu_custom_call.1} parent=1 // pred_region
      %48 = dma.done [#allocation4], 256
    $region13: #{tpu_custom_call.1} parent=1 // pred_fallthru
      _
    // Predicated region
    $region14: #{tpu_custom_call.1} parent=1 // pred_check
      _
    $region15: #{tpu_custom_call.1} parent=1 // pred_check_branch
      %50 = sbr.rel (0) target = $region17
    $region16: #{tpu_custom_call.1} parent=1 // pred_region
      %51 = dma.done [#allocation7], 256
    $region17: #{tpu_custom_call.1} parent=1 // pred_fallthru
      _
    %s52 = sadd.s32 0, 0
    %p53 = scmp.lt.s32.totalorder %s52, 0
    %s54 = scalar_select %p53, %s52, 0
    %s55 = smul.u32 2, %s54
    %s56 = sadd.s32 0, 0
    %p57 = scmp.lt.s32.totalorder %s56, 0
    %s58 = scalar_select %p57, %s56, 0
    %s59 = smul.u32 2, %s58
    %p60 = scmp.eq.s32.totalorder 0, 0
    // Predicated region
    $region18: #{tpu_custom_call.1} parent=1 // pred_check
      %p61 = pneg %p60
    $region19: #{tpu_custom_call.1} parent=1 // pred_check_branch
      %63 = sbr.rel (%p61) target = $region21
    $region20: #{tpu_custom_call.1} parent=1 // pred_region
      %64 = vst [vmem:[#allocation2] sm:$0xff] 0.0
      %65 = vst [vmem:[#allocation2 + $0x8] sm:$0xff] 0.0
    $region21: #{tpu_custom_call.1} parent=1 // pred_fallthru
      _
    %s66 = sadd.s32 0, 0
    %s67 = smul.u32 %s66, 16
    %s68 = sadd.s32 %s67, 16
    %p69 = scmp.le.s32.totalorder %s68, 16
    // Predicated region
    $region22: #{tpu_custom_call.1} parent=1 // pred_check
      %p70 = pneg %p69
    $region23: #{tpu_custom_call.1} parent=1 // pred_check_branch
      %72 = sbr.rel (%p70) target = $region25
    $region24: #{tpu_custom_call.1} parent=1 // pred_region
      %v73 = vld [vmem:[#allocation6] sm:$0xff]
      %v74 = vld [vmem:[#allocation6 + $0x8] sm:$0xff]
      %v75 = vld [vmem:[#allocation3] sm:$0xff]
      %v76 = vld [vmem:[#allocation3 + $0x8] sm:$0xff]
      %v77 = vsub.f32 %v73, %v75
      %v78 = vsub.f32 %v74, %v76
      %v79 = vmul.f32 %v77, %v77
      %v80 = vmul.f32 %v78, %v78
      %v81 = vmul.f32 %v73, 9.0
      %v82 = vmul.f32 %v74, 9.0
      %v83 = vadd.f32 %v81, 1.0
      %v84 = vadd.f32 %v82, 1.0
      %v85 = vmul.f32 %v79, %v83
      %v86 = vmul.f32 %v80, %v84
      %v87 = vld [vmem:[#allocation2] sm:$0xff]
      %v88 = vld [vmem:[#allocation2 + $0x8] sm:$0xff]
      %v89 = vadd.f32 %v85, 0.0
      %v90 = vadd.f32 %v86, 0.0
      %v91 = vadd.f32 %v87, %v89
      %v92 = vadd.f32 %v88, %v90
      %93 = vst [vmem:[#allocation2] sm:$0xff] %v91
      %94 = vst [vmem:[#allocation2 + $0x8] sm:$0xff] %v92
    $region25: #{tpu_custom_call.1} parent=1 // pred_fallthru
      _
    %p95 = scmp.lt.s32.totalorder %s67, 16
    %p96 = scmp.gt.s32.totalorder %s68, 16
    %p97 = pnand %p95, %p96
    %p98 = pneg %p97
    // Predicated region
    $region26: #{tpu_custom_call.1} parent=1 // pred_check
      _
    $region27: #{tpu_custom_call.1} parent=1 // pred_check_branch
      %100 = sbr.rel (%p97) target = $region29
    $region28: #{tpu_custom_call.1} parent=1 // pred_region
      %v101 = vld [vmem:[#allocation6] sm:$0xff]
      %v102 = vld [vmem:[#allocation6 + $0x8] sm:$0xff]
      %v103 = vld [vmem:[#allocation3] sm:$0xff]
      %v104 = vld [vmem:[#allocation3 + $0x8] sm:$0xff]
      %v105 = vsub.f32 %v101, %v103
      %v106 = vsub.f32 %v102, %v104
      %v107 = vmul.f32 %v105, %v105
      %v108 = vmul.f32 %v106, %v106
      %v109 = vmul.f32 %v101, 9.0
      %v110 = vmul.f32 %v102, 9.0
      %v111 = vadd.f32 %v109, 1.0
      %v112 = vadd.f32 %v110, 1.0
      %v113 = vmul.f32 %v107, %v111
      %v114 = vmul.f32 %v108, %v112
      %v115 = vlaneseq
      %v116 = vshrl.u32 %v115, 7
      %v117 = vadd.s32 %v116, 8
      %v118 = vstv %s67
      %v119 = vadd.s32 %v118, %v116
      %v120 = vadd.s32 %v118, %v117
      %vm121 = vcmp.lt.s32.totalorder %v119, 16
      %vm122 = vcmp.lt.s32.totalorder %v120, 16
      %v123 = vsel %vm121, %v113, 0.0
      %v124 = vsel %vm122, %v114, 0.0
      %v125 = vld [vmem:[#allocation2] sm:$0xff]
      %v126 = vld [vmem:[#allocation2 + $0x8] sm:$0xff]
      %v127 = vadd.f32 %v123, 0.0
      %v128 = vadd.f32 %v124, 0.0
      %v129 = vadd.f32 %v125, %v127
      %v130 = vadd.f32 %v126, %v128
      %131 = vst [vmem:[#allocation2] sm:$0xff] %v129
      %132 = vst [vmem:[#allocation2 + $0x8] sm:$0xff] %v130
    $region29: #{tpu_custom_call.1} parent=1 // pred_fallthru
      _
    // Predicated region
    $region30: #{tpu_custom_call.1} parent=1 // pred_check
      %p133 = pneg %p60
    $region31: #{tpu_custom_call.1} parent=1 // pred_check_branch
      %135 = sbr.rel (%p133) target = $region33
    $region32: #{tpu_custom_call.1} parent=1 // pred_region
      %v136 = vld [vmem:[#allocation2] sm:$0xff]
      %v137 = vld [vmem:[#allocation2 + $0x8] sm:$0xff]
      %v138 = vadd.f32 %v136, %v137
      %v139 = vrot.slane %v138, 4
      %v140 = vadd.f32 %v138, %v139
      %v141 = vrot.slane %v140, 2
      %v142 = vadd.f32 %v140, %v141
      %v143 = vrot.slane %v142, 1
      %v144 = vadd.f32 %v142, %v143
      %145 = vst [vmem:[#allocation8] sm:$0x1] %v144
    $region33: #{tpu_custom_call.1} parent=1 // pred_fallthru
      _
    // Predicated region
    $region34: #{tpu_custom_call.1} parent=1 // pred_check
      _
    $region35: #{tpu_custom_call.1} parent=1 // pred_check_branch
      %147 = sbr.rel (0) target = $region37
    $region36: #{tpu_custom_call.1} parent=1 // pred_region
      %s149 = ssub.s32 16, 16
      %150 = vsyncadd [#allocation5], %s149
      %s152 = sshll.u32 [#allocation8], 4
      %s153 = int_to_ptr.vmem [resolvable:$true] %s152
      %155 = dma.vmem_to_hbm [thread:$0]  %s153, 16, %s2, [#allocation5]
    $region37: #{tpu_custom_call.1} parent=1 // pred_fallthru
      _
    // Predicated region
    $region38: #{tpu_custom_call.1} parent=1 // pred_check
      _
    $region39: #{tpu_custom_call.1} parent=1 // pred_check_branch
      %157 = sbr.rel (0) target = $region41
    $region40: #{tpu_custom_call.1} parent=1 // pred_region
      %158 = dma.done [#allocation5], 16
    $region41: #{tpu_custom_call.1} parent=1 // pred_fallthru
      _
    %159 = vsyncpa [#allocation4], 1
    %160 = vsyncpa [#allocation7], 1
    %161 = vsyncpa [#allocation5], 1

</llo_original>
